<compile_context>
chip_gen: v5e
topology: v5e:2x2
jax: 0.10.0
libtpu: 0.0.40
codegen_flags: <defaults>
</compile_context>

<pallas_src>
import jax
import jax.numpy as jnp
from jax.experimental import pallas as pl
from jax.experimental.pallas import tpu as pltpu


def gelu_kernel(x_ref, o_ref):
    x = x_ref[...]
    # bf16 stays bf16 (v6e/v7x have bf16 VALU/EUP; Mosaic upcasts on v5e anyway).
    # Any other dtype is computed in f32.
    if x.dtype != jnp.bfloat16:
        x = x.astype(jnp.float32)
    # Faithful to the module's forward (these exact constants are the spec):
    # 0.5 * x * (1 + tanh(x * (1.27323954 + 0.4054914823 * x * x)))
    inner = x * (1.27323954 + 0.4054914823 * x * x)
    y = 0.5 * x * (1.0 + jnp.tanh(inner))
    o_ref[...] = y.astype(o_ref.dtype)


def gelu(x, *, block_bytes=4 * 1024 * 1024):
    """Elementwise GELU (the module's tanh variant) as a Pallas TPU kernel.

    Fast path: if the element count is a multiple of 128, the tensor is
    reshaped zero-copy to (rows, L) with L in {2048,...,128}; no pad, no
    trailing slice, and the last grid block is ragged (Pallas masks the
    partial store). Only truly non-aligned sizes take the pad/slice path.
    Blocks target ~4 MiB each -> ~16 MiB VMEM with double-buffered in+out;
    vmem_limit_bytes=32 MiB keeps that legal on v5e's smaller scoped default.
    """
    orig_shape = x.shape
    n = x.size
    if n == 0:
        return x
    dtype = x.dtype
    itemsize = jnp.dtype(dtype).itemsize

    # Pick the widest lane width (multiple of 128) that divides n -> zero-copy.
    L = None
    for cand in (2048, 1024, 512, 256, 128):
        if n % cand == 0:
            L = cand
            break

    if L is not None:
        x2d = x.reshape(n // L, L)
        padded = False
    else:
        # Rare path: pad flat length up to a multiple of 128 (at most 127 elems).
        L = 128
        pad = (-n) % L
        flat = jnp.pad(jnp.ravel(x), (0, pad))
        x2d = flat.reshape((n + pad) // L, L)
        padded = True

    rows = x2d.shape[0]

    # Rows per block targeting ~block_bytes per block (multiple of 8 sublanes).
    tr = max(block_bytes // (L * itemsize), 8)
    tr = (tr // 8) * 8
    tr = min(tr, rows)  # if rows < tr, block == full row dim (allowed)

    # v7x has 2 TensorCores; keep at least 2 "parallel" blocks when possible.
    if pl.cdiv(rows, tr) < 2 and rows > 8:
        half_rows = ((rows + 1) // 2 + 7) // 8 * 8
        tr = min(tr, half_rows)

    grid = pl.cdiv(rows, tr)

    out = pl.pallas_call(
        gelu_kernel,
        out_shape=jax.ShapeDtypeStruct((rows, L), dtype),
        grid_spec=pltpu.PrefetchScalarGridSpec(
            num_scalar_prefetch=0,
            grid=(grid,),
            in_specs=[pl.BlockSpec((tr, L), lambda i: (i, 0))],
            out_specs=pl.BlockSpec((tr, L), lambda i: (i, 0)),
        ),
        compiler_params=pltpu.CompilerParams(
            dimension_semantics=("parallel",),
            vmem_limit_bytes=32 * 1024 * 1024,
        ),
    )(x2d)

    if padded:
        return out.reshape(-1)[:n].reshape(orig_shape)
    return out.reshape(orig_shape)


def gelu_ref(x):
    xf = x.astype(jnp.float32)
    y = 0.5 * xf * (1.0 + jnp.tanh(xf * (1.27323954 + 0.4054914823 * xf * xf)))
    return y.astype(x.dtype)


if __name__ == "__main__":
    key = jax.random.PRNGKey(0)
    # small example consistent with a transformer activation: (batch=2, seq=8, hidden=128)
    x = jax.random.normal(key, (2, 8, 128), dtype=jnp.float32)

    y = gelu(x)
    jax.block_until_ready(y)

    y_ref = gelu_ref(x)
    assert y.shape == x.shape and y.dtype == x.dtype
    assert jnp.allclose(y, y_ref, atol=1e-5, rtol=1e-5)

    # non-divisible shape exercises the (rare) pad/slice path + ragged grid
    x2 = jax.random.normal(jax.random.PRNGKey(1), (3, 17, 96), dtype=jnp.bfloat16)
    y2 = gelu(x2)
    jax.block_until_ready(y2)
    assert y2.shape == x2.shape and y2.dtype == x2.dtype
    assert jnp.allclose(y2.astype(jnp.float32), gelu_ref(x2).astype(jnp.float32),
                        atol=2e-2, rtol=2e-2)

    print("KERNEL_OK")
</pallas_src>

<mosaic_0001>
module attributes {stable_mosaic.version = 11 : i64} {
  func.func @gelu_kernel(%arg0: i32, %arg1: memref<1x2048xf32, #tpu.memory_space<vmem>>, %arg2: memref<1x2048xf32, #tpu.memory_space<vmem>>) attributes {dimension_semantics = [#tpu.dimension_semantics<parallel>], iteration_bounds = array<i64: 1>, scalar_prefetch = 0 : i64, scratch_operands = 0 : i64, tpu.core_type = #tpu.core_type<tc>, window_params = [{transform_indices = @transform_0, window_bounds = array<i64: 1, 2048>}, {transform_indices = @transform_1, window_bounds = array<i64: 1, 2048>}]} {
    %c0 = arith.constant 0 : index
    %c0_0 = arith.constant 0 : index
    %0 = vector.load %arg1[%c0, %c0_0] : memref<1x2048xf32, #tpu.memory_space<vmem>>, vector<1x2048xf32>
    %cst = arith.constant 0.405491471 : f32
    %1 = vector.broadcast %cst : f32 to vector<1x2048xf32>
    %2 = arith.mulf %1, %0 : vector<1x2048xf32>
    %3 = arith.mulf %2, %0 : vector<1x2048xf32>
    %cst_1 = arith.constant 1.27323949 : f32
    %4 = vector.broadcast %cst_1 : f32 to vector<1x2048xf32>
    %5 = arith.addf %4, %3 : vector<1x2048xf32>
    %6 = arith.mulf %0, %5 : vector<1x2048xf32>
    %cst_2 = arith.constant 5.000000e-01 : f32
    %7 = vector.broadcast %cst_2 : f32 to vector<1x2048xf32>
    %8 = arith.mulf %7, %0 : vector<1x2048xf32>
    %9 = math.tanh %6 : vector<1x2048xf32>
    %cst_3 = arith.constant 1.000000e+00 : f32
    %10 = vector.broadcast %cst_3 : f32 to vector<1x2048xf32>
    %11 = arith.addf %10, %9 : vector<1x2048xf32>
    %12 = arith.mulf %8, %11 : vector<1x2048xf32>
    %c0_4 = arith.constant 0 : index
    %c0_5 = arith.constant 0 : index
    %13 = vector.load %arg2[%c0_4, %c0_5] : memref<1x2048xf32, #tpu.memory_space<vmem>>, vector<1x2048xf32>
    tpu.vector_store %arg2[%c0_4, %c0_5], %12 {strides = array<i32>} : memref<1x2048xf32, #tpu.memory_space<vmem>>, vector<1x2048xf32>,
    return
  }
  func.func @transform_0(%arg0: i32) -> (i32, i32) {
    %c0_i32 = arith.constant 0 : i32
    %c0_i32_0 = arith.constant 0 : i32
    return %arg0, %c0_i32 : i32, i32
  }
  func.func @transform_1(%arg0: i32) -> (i32, i32) {
    %c0_i32 = arith.constant 0 : i32
    %c0_i32_0 = arith.constant 0 : i32
    return %arg0, %c0_i32 : i32, i32
  }
}

</mosaic_0001>

<llo_original>
// kernel: tpu_custom_call.1
$region0: #{tpu_custom_call.1}
  #allocation0 [shape = 'u32[]', space=smem, size = 0x4, offset = 0x4, fixed_abs, tag = 'smem constant byte address 0x4 - core index']
  #allocation1 [shape = 'u32[72,128]{1,0:T(1,128)}', space=vmem, size = 0x9000, scoped, tag = 'internal scratch']
  %s0 = inlined_call_operand.hbm [shape: f32[1,2048], index: 0, kind: input, shape index: {}]
  %s1 = inlined_call_operand.hbm [shape: f32[1,2048], index: 1, kind: output, shape index: {}]
  %s2 = sld [smem:[#allocation0]]
  $region18: #{tpu_custom_call.1} parent=0
    _
  %s4 = ssub.s32 1, %s2
  %s5 = scalar_select 0, %s4, %s2
  $region1: #{tpu_custom_call.1} parent=0
    #allocation2 [shape = 'u8[8192]{0}', space=vmem, size = 0x2000, scoped, tag = 'input window, operand 0, single buffered']
    #allocation3 [shape = 's32[1]{0}', space=sflag, size = 0x4, scoped, tag = 'scoped memory for tpu_custom_call.1']
    #allocation4 [shape = 's32[1]{0}', space=sflag, size = 0x4, scoped, tag = 'scoped memory for tpu_custom_call.1']
    #allocation5 [shape = 'u8[8192]{0}', space=vmem, size = 0x2000, scoped, tag = 'output window, operand 0, single buffered']
    %6 = vsyncpa [#allocation3], 0
    %7 = vsyncpa [#allocation4], 0
    // Predicated region
    $region2: #{tpu_custom_call.1} parent=1 // pred_check
      _
    $region3: #{tpu_custom_call.1} parent=1 // pred_check_branch
      %9 = sbr.rel (0) target = $region5
    $region4: #{tpu_custom_call.1} parent=1 // pred_region
      %11 = vsyncadd [#allocation3], 0
      %s13 = sshll.u32 %s0, 4
      %s14 = int_to_ptr.hbm [resolvable:$true] %s13
      %s15 = sshll.u32 [#allocation2], 4
      %s16 = int_to_ptr.vmem [resolvable:$true] %s15
      %18 = dma.hbm_to_vmem [thread:$0]  %s14, 256, %s16, [#allocation3]
    $region5: #{tpu_custom_call.1} parent=1 // pred_fallthru
      _
    // Predicated region
    $region6: #{tpu_custom_call.1} parent=1 // pred_check
      _
    $region7: #{tpu_custom_call.1} parent=1 // pred_check_branch
      %20 = sbr.rel (0) target = $region9
    $region8: #{tpu_custom_call.1} parent=1 // pred_region
      %22 = dma.done [#allocation3], 256
    $region9: #{tpu_custom_call.1} parent=1 // pred_fallthru
      _
    %v23 = vld [vmem:[#allocation2] sm:$0xff]
    %v24 = vld [vmem:[#allocation2 + $0x8] sm:$0xff]
    %v25 = vmul.f32 %v23, 0.40549147
    %v26 = vmul.f32 %v24, 0.40549147
    %v27 = vmul.f32 %v25, %v23
    %v28 = vmul.f32 %v26, %v24
    %v29 = vadd.f32 %v27, 1.2732395
    %v30 = vadd.f32 %v28, 1.2732395
    %v31 = vmul.f32 %v23, %v29
    %v32 = vmul.f32 %v24, %v30
    %v33 = vmul.f32 %v23, 0.5
    %v34 = vmul.f32 %v24, 0.5
    %v35 = vtanh.pop %v31
    %v36 = vtanh.pop %v32
    %v37 = vadd.f32 %v35, 1.0
    %v38 = vadd.f32 %v36, 1.0
    %v39 = vmul.f32 %v33, %v37
    %v40 = vmul.f32 %v34, %v38
    %41 = vst [vmem:[#allocation5] sm:$0xff] %v39
    %42 = vst [vmem:[#allocation5 + $0x8] sm:$0xff] %v40
    // Predicated region
    $region10: #{tpu_custom_call.1} parent=1 // pred_check
      _
    $region11: #{tpu_custom_call.1} parent=1 // pred_check_branch
      %44 = sbr.rel (0) target = $region13
    $region12: #{tpu_custom_call.1} parent=1 // pred_region
      %46 = vsyncadd [#allocation4], 0
      %s48 = sshll.u32 [#allocation5], 4
      %s49 = int_to_ptr.vmem [resolvable:$true] %s48
      %s50 = sshll.u32 %s1, 4
      %s51 = int_to_ptr.hbm [resolvable:$true] %s50
      %53 = dma.vmem_to_hbm [thread:$0]  %s49, 256, %s51, [#allocation4]
    $region13: #{tpu_custom_call.1} parent=1 // pred_fallthru
      _
    // Predicated region
    $region14: #{tpu_custom_call.1} parent=1 // pred_check
      _
    $region15: #{tpu_custom_call.1} parent=1 // pred_check_branch
      %55 = sbr.rel (0) target = $region17
    $region16: #{tpu_custom_call.1} parent=1 // pred_region
      %57 = dma.done [#allocation4], 256
    $region17: #{tpu_custom_call.1} parent=1 // pred_fallthru
      _
    %58 = vsyncpa [#allocation3], 1
    %59 = vsyncpa [#allocation4], 1

</llo_original>
